<compile_context>
chip_gen: v7x
topology: tpu7x:2x2x1
jax: 0.10.0
libtpu: 0.0.40
codegen_flags: <defaults>
</compile_context>

<pallas_src>
import functools

import jax
import jax.numpy as jnp
from jax.experimental import pallas as pl
from jax.experimental.pallas import tpu as pltpu


def _mean_kernel(x_ref, o_ref, acc_ref, *, n_total, tm, tn):
    """Accumulate row sums across the N grid axis; finalize with 1/N."""
    k = pl.program_id(1)              # N (reduction) axis — trailing, "arbitrary"
    nk = pl.num_programs(1)

    @pl.when(k == 0)
    def _():
        acc_ref[...] = jnp.zeros_like(acc_ref)

    def accumulate(x):
        # (tm, tn) -> (tm//8, 8, tn): each group of 8 rows maps exactly onto
        # one sublane group, so the axis-0 reduce and the (8, tn) accumulator
        # update stay on the VPU (no cross-sublane XLU work in the hot loop).
        # dtype=f32 fuses the upcast into the reduce for bf16/int8 inputs.
        xr = x.reshape(tm // 8, 8, tn)
        acc_ref[...] += jnp.sum(xr, axis=0, dtype=jnp.float32)

    tail = n_total % tm
    if tail == 0:
        accumulate(x_ref[...])
    else:
        # Only the final N block is partial -> only it pays the mask cost.
        @pl.when(k < nk - 1)
        def _():
            accumulate(x_ref[...])

        @pl.when(k == nk - 1)
        def _():
            x = x_ref[...]
            row = k * tm + jax.lax.broadcasted_iota(jnp.int32, x.shape, 0)
            accumulate(jnp.where(row < n_total, x, jnp.zeros_like(x)))

    @pl.when(k == nk - 1)
    def _():
        # One cross-sublane reduce per D tile, then scale by 1/N.
        s = jnp.sum(acc_ref[...], axis=0, keepdims=True)
        o_ref[...] = (s * (1.0 / n_total)).astype(o_ref.dtype)


def _vmem_budget():
    """Hardware-aware (input_block_bytes, vmem_capacity_bytes)."""
    cap = 64 * 1024 * 1024  # conservative fallback (v7x per-TC VMEM)
    try:
        info = pltpu.get_tpu_info()
        cap = int(getattr(info, "vmem_capacity_bytes", cap)) or cap
    except Exception:
        pass
    # ~capacity/8 per input block (double-buffered by the pipeline), clamped
    # to [4 MiB, 16 MiB]: 16 MiB on 128 MiB parts (v5e/v6e), 8 MiB on v7x.
    block_bytes = min(max(cap // 8, 4 * 1024 * 1024), 16 * 1024 * 1024)
    return block_bytes, cap


def _pick_lane_tile(d):
    """Lane (fast) tile: as wide as possible, but split into >=2 tiles when D
    allows so the megacore-parallel grid axis feeds both v7x TensorCores."""
    if d >= 1024:
        best = 0
        hi = min(2048, d // 2)
        for cand in range(512, hi + 1, 128):   # keep rows reasonably contiguous
            if d % cand == 0:
                best = cand
        if best:
            return best
        for cand in (2048, 1024, 512, 256, 128):   # very wide / awkward D
            if d % cand == 0:
                return cand
    return d


def _pick_row_tile(n, tn, itemsize, block_bytes):
    """Row tile sized to ~block_bytes, multiple of 8, capped near N."""
    eff = max(itemsize, 4)                 # account for f32 accumulation temps
    tm = max(8, (block_bytes // (tn * eff)) // 8 * 8)
    n_pad = ((n + 7) // 8) * 8
    return min(tm, n_pad)


def aggregator_forward(x, *, tm=None, tn=None, use_fast_path=True):
    """Mean over dim 0 with a leading singleton dim: (N, D) -> (1, D)."""
    n, d = x.shape
    itemsize = jnp.dtype(x.dtype).itemsize

    # Tiny inputs (only a grid step or two of data): pallas_call launch
    # overhead + losing XLA's fusion into the consumer beats any kernel win.
    if use_fast_path and n * d * itemsize < (4 << 20):
        return jnp.mean(x, axis=0, keepdims=True)

    block_bytes, vmem_cap = _vmem_budget()
    if tn is None:
        tn = _pick_lane_tile(d)
    if tm is None:
        tm = _pick_row_tile(n, tn, itemsize, block_bytes)
    assert d % tn == 0 and (tn % 128 == 0 or tn == d), "lane tile must divide D"
    assert tm % 8 == 0, "row tile must be a multiple of 8"

    grid = (d // tn, pl.cdiv(n, tm))  # (D: parallel, N: arbitrary reduction)
    kernel = functools.partial(_mean_kernel, n_total=n, tm=tm, tn=tn)

    # VMEM budget: 2x double-buffered input block + output/scratch + headroom,
    # never above ~3/4 of physical VMEM (stays inside v7x's 64 MiB).
    block_in = tm * tn * max(itemsize, 4)
    vmem_limit = int(max(32 << 20, min(vmem_cap * 3 // 4,
                                       2 * block_in + (16 << 20))))

    return pl.pallas_call(
        kernel,
        out_shape=jax.ShapeDtypeStruct((1, d), x.dtype),
        grid_spec=pltpu.PrefetchScalarGridSpec(
            num_scalar_prefetch=0,
            grid=grid,
            in_specs=[pl.BlockSpec((tm, tn), lambda j, k: (k, j))],
            out_specs=pl.BlockSpec((1, tn), lambda j, k: (0, j)),
            scratch_shapes=[pltpu.VMEM((8, tn), jnp.float32)],
        ),
        compiler_params=pltpu.CompilerParams(
            dimension_semantics=("parallel", "arbitrary"),
            vmem_limit_bytes=vmem_limit,
        ),
    )(x)


if __name__ == "__main__":
    key = jax.random.PRNGKey(0)
    k1, k2, k3 = jax.random.split(key, 3)

    # Small "bag of cells" case (takes the tiny-input fast path).
    x_small = jax.random.normal(k1, (16, 256), dtype=jnp.float32)
    out_small = jax.block_until_ready(aggregator_forward(x_small))
    ref_small = jnp.mean(x_small, axis=0, keepdims=True)
    assert out_small.shape == (1, 256)
    assert jnp.allclose(out_small, ref_small, atol=1e-5, rtol=1e-5)

    # Moderate case forced through the Pallas kernel with explicit tiles:
    # exercises the multi-block N reduction and the last-block-only tail mask.
    x_big = jax.random.normal(k2, (1000, 384), dtype=jnp.float32)
    out_big = jax.block_until_ready(
        aggregator_forward(x_big, tm=256, tn=128, use_fast_path=False))
    ref_big = jnp.mean(x_big, axis=0, keepdims=True)
    assert out_big.shape == (1, 384)
    assert jnp.allclose(out_big, ref_big, atol=1e-5, rtol=1e-5)

    # Same case with automatic tile selection (full-D lane tile, one N block).
    out_auto = jax.block_until_ready(
        aggregator_forward(x_big, use_fast_path=False))
    assert out_auto.shape == (1, 384)
    assert jnp.allclose(out_auto, ref_big, atol=1e-5, rtol=1e-5)

    # Wide-D case: exercises the split "parallel" D axis (>= 2 lane tiles).
    x_wide = jax.random.normal(k3, (512, 1536), dtype=jnp.float32)
    out_wide = jax.block_until_ready(
        aggregator_forward(x_wide, use_fast_path=False))
    ref_wide = jnp.mean(x_wide, axis=0, keepdims=True)
    assert out_wide.shape == (1, 1536)
    assert jnp.allclose(out_wide, ref_wide, atol=1e-5, rtol=1e-5)

    # bf16 input: fused-upcast f32 accumulation path.
    x_bf16 = x_big.astype(jnp.bfloat16)
    out_bf16 = jax.block_until_ready(
        aggregator_forward(x_bf16, use_fast_path=False))
    ref_bf16 = jnp.mean(x_bf16.astype(jnp.float32), axis=0, keepdims=True)
    assert out_bf16.shape == (1, 384)
    assert jnp.allclose(out_bf16.astype(jnp.float32), ref_bf16,
                        atol=2e-2, rtol=2e-2)

    print("KERNEL_OK")
</pallas_src>

<mosaic_0001>
module attributes {stable_mosaic.version = 11 : i64} {
  func.func @_mean_kernel(%arg0: i32, %arg1: i32, %arg2: memref<256x128xf32, #tpu.memory_space<vmem>>, %arg3: memref<1x128xf32, #tpu.memory_space<vmem>>, %arg4: memref<8x128xf32, #tpu.memory_space<vmem>>) attributes {dimension_semantics = [#tpu.dimension_semantics<parallel>, #tpu.dimension_semantics<arbitrary>], iteration_bounds = array<i64: 3, 4>, scalar_prefetch = 0 : i64, scratch_operands = 1 : i64, tpu.core_type = #tpu.core_type<tc>, window_params = [{transform_indices = @transform_0, window_bounds = array<i64: 256, 128>}, {transform_indices = @transform_1, window_bounds = array<i64: 1, 128>}]} {
    %c0_i32 = arith.constant 0 : i32
    %0 = arith.cmpi eq, %arg1, %c0_i32 : i32
    %1 = arith.extui %0 : i1 to i32
    %c0_i32_0 = arith.constant 0 : i32
    %2 = arith.cmpi ne, %1, %c0_i32_0 : i32
    scf.if %2 {
      %cst = arith.constant 0.000000e+00 : f32
      %12 = vector.broadcast %cst : f32 to vector<8x128xf32>
      %c0 = arith.constant 0 : index
      %c0_6 = arith.constant 0 : index
      %13 = vector.load %arg4[%c0, %c0_6] : memref<8x128xf32, #tpu.memory_space<vmem>>, vector<8x128xf32>
      tpu.vector_store %arg4[%c0, %c0_6], %12 {strides = array<i32>} : memref<8x128xf32, #tpu.memory_space<vmem>>, vector<8x128xf32>,
    } else {
    }
    %c3_i32 = arith.constant 3 : i32
    %3 = arith.cmpi slt, %arg1, %c3_i32 : i32
    %4 = arith.extui %3 : i1 to i32
    %c0_i32_1 = arith.constant 0 : i32
    %5 = arith.cmpi ne, %4, %c0_i32_1 : i32
    scf.if %5 {
      %c0 = arith.constant 0 : index
      %c0_6 = arith.constant 0 : index
      %12 = vector.load %arg2[%c0, %c0_6] : memref<256x128xf32, #tpu.memory_space<vmem>>, vector<256x128xf32>
      %13 = vector.shape_cast %12 : vector<256x128xf32> to vector<32x8x128xf32>
      %c0_7 = arith.constant 0 : index
      %c0_8 = arith.constant 0 : index
      %14 = vector.load %arg4[%c0_7, %c0_8] : memref<8x128xf32, #tpu.memory_space<vmem>>, vector<8x128xf32>
      %cst = arith.constant dense<0.000000e+00> : vector<8x128xf32>
      %15 = vector.multi_reduction <add>, %13, %cst [0] : vector<32x8x128xf32> to vector<8x128xf32>
      %16 = arith.addf %14, %15 : vector<8x128xf32>
      %c0_9 = arith.constant 0 : index
      %c0_10 = arith.constant 0 : index
      %17 = vector.load %arg4[%c0_9, %c0_10] : memref<8x128xf32, #tpu.memory_space<vmem>>, vector<8x128xf32>
      tpu.vector_store %arg4[%c0_9, %c0_10], %16 {strides = array<i32>} : memref<8x128xf32, #tpu.memory_space<vmem>>, vector<8x128xf32>,
    } else {
    }
    %c3_i32_2 = arith.constant 3 : i32
    %6 = arith.cmpi eq, %arg1, %c3_i32_2 : i32
    %7 = arith.extui %6 : i1 to i32
    %c0_i32_3 = arith.constant 0 : i32
    %8 = arith.cmpi ne, %7, %c0_i32_3 : i32
    scf.if %8 {
      %c0 = arith.constant 0 : index
      %c0_6 = arith.constant 0 : index
      %12 = vector.load %arg2[%c0, %c0_6] : memref<256x128xf32, #tpu.memory_space<vmem>>, vector<256x128xf32>
      %c256_i32 = arith.constant 256 : i32
      %13 = arith.muli %arg1, %c256_i32 : i32
      %14 = tpu.iota {dimensions = array<i32: 0>} : vector<256x128xi32>
      %15 = vector.broadcast %13 : i32 to vector<256x128xi32>
      %16 = arith.addi %15, %14 : vector<256x128xi32>
      %c1000_i32 = arith.constant 1000 : i32
      %17 = vector.broadcast %c1000_i32 : i32 to vector<256x128xi32>
      %18 = arith.cmpi slt, %16, %17 : vector<256x128xi32>
      %cst = arith.constant 0.000000e+00 : f32
      %19 = vector.broadcast %cst : f32 to vector<256x128xf32>
      %20 = arith.select %18, %12, %19 : vector<256x128xi1>, vector<256x128xf32>
      %21 = vector.shape_cast %20 : vector<256x128xf32> to vector<32x8x128xf32>
      %c0_7 = arith.constant 0 : index
      %c0_8 = arith.constant 0 : index
      %22 = vector.load %arg4[%c0_7, %c0_8] : memref<8x128xf32, #tpu.memory_space<vmem>>, vector<8x128xf32>
      %cst_9 = arith.constant dense<0.000000e+00> : vector<8x128xf32>
      %23 = vector.multi_reduction <add>, %21, %cst_9 [0] : vector<32x8x128xf32> to vector<8x128xf32>
      %24 = arith.addf %22, %23 : vector<8x128xf32>
      %c0_10 = arith.constant 0 : index
      %c0_11 = arith.constant 0 : index
      %25 = vector.load %arg4[%c0_10, %c0_11] : memref<8x128xf32, #tpu.memory_space<vmem>>, vector<8x128xf32>
      tpu.vector_store %arg4[%c0_10, %c0_11], %24 {strides = array<i32>} : memref<8x128xf32, #tpu.memory_space<vmem>>, vector<8x128xf32>,
    } else {
    }
    %c3_i32_4 = arith.constant 3 : i32
    %9 = arith.cmpi eq, %arg1, %c3_i32_4 : i32
    %10 = arith.extui %9 : i1 to i32
    %c0_i32_5 = arith.constant 0 : i32
    %11 = arith.cmpi ne, %10, %c0_i32_5 : i32
    scf.if %11 {
      %c0 = arith.constant 0 : index
      %c0_6 = arith.constant 0 : index
      %12 = vector.load %arg4[%c0, %c0_6] : memref<8x128xf32, #tpu.memory_space<vmem>>, vector<8x128xf32>
      %cst = arith.constant dense<0.000000e+00> : vector<128xf32>
      %13 = vector.multi_reduction <add>, %12, %cst [0] : vector<8x128xf32> to vector<128xf32>
      %14 = vector.shape_cast %13 : vector<128xf32> to vector<1x128xf32>
      %cst_7 = arith.constant 1.000000e-03 : f32
      %15 = vector.broadcast %cst_7 : f32 to vector<1x128xf32>
      %16 = arith.mulf %14, %15 : vector<1x128xf32>
      %c0_8 = arith.constant 0 : index
      %c0_9 = arith.constant 0 : index
      %17 = vector.load %arg3[%c0_8, %c0_9] : memref<1x128xf32, #tpu.memory_space<vmem>>, vector<1x128xf32>
      tpu.vector_store %arg3[%c0_8, %c0_9], %16 {strides = array<i32>} : memref<1x128xf32, #tpu.memory_space<vmem>>, vector<1x128xf32>,
    } else {
    }
    return
  }
  func.func @transform_0(%arg0: i32, %arg1: i32) -> (i32, i32) {
    %c0_i32 = arith.constant 0 : i32
    return %arg1, %arg0 : i32, i32
  }
  func.func @transform_1(%arg0: i32, %arg1: i32) -> (i32, i32) {
    %c0_i32 = arith.constant 0 : i32
    %c0_i32_0 = arith.constant 0 : i32
    return %c0_i32, %arg0 : i32, i32
  }
}

</mosaic_0001>

<llo_original>
// kernel: tpu_custom_call.1
$region0: #{tpu_custom_call.1}
  #allocation0 [shape = 'u32[]', space=smem, size = 0x4, offset = 0x4, fixed_abs, tag = 'smem constant byte address 0x4 - core index']
  #allocation1 [shape = 'u32[144,128]{1,0:T(1,128)}', space=vmem, size = 0x12000, scoped, tag = 'internal scratch']
  #allocation2 [shape = 'f32[8,128]{1,0:T(8,128)}', space=vmem, size = 0x1000, scoped, tag = 'scratch operand']
  %s0 = inlined_call_operand.hbm [shape: f32[1000,384], index: 0, kind: input, shape index: {}]
  %s1 = inlined_call_operand.hbm [shape: f32[1,384], index: 1, kind: output, shape index: {}]
  %s2 = sld [smem:[#allocation0]]
  $region53: #{tpu_custom_call.1} parent=0
    _
  %s4 = ssub.s32 1, %s2
  %s5 = scalar_select 0, %s4, %s2
  $region1: #{tpu_custom_call.1} parent=0
    #allocation3 [shape = 'u8[262144]{0}', space=vmem, size = 0x40000, scoped, tag = 'input window, operand 0']
    #allocation4 [shape = 's32[2]{0}', space=sflag, size = 0x8, scoped, tag = 'scoped memory for tpu_custom_call.1']
    #allocation5 [shape = 's32[2]{0}', space=sflag, size = 0x8, scoped, tag = 'scoped memory for tpu_custom_call.1']
    #allocation6 [shape = 'u8[1024]{0}', space=vmem, size = 0x400, scoped, tag = 'output window, operand 0']
    %6 = vsyncpa [#allocation4], 0
    %s7 = scalar_lea.sflag [#allocation4], 1
    %8 = vsyncpa %s7, 0
    %9 = vsyncpa [#allocation5], 0
    %s10 = scalar_lea.sflag [#allocation5], 1
    %11 = vsyncpa %s10, 0
    loop: start=0, step=1, limit=14
    $region2: #{tpu_custom_call.1} parent=1 // loop_pre_header
      _
    $region3: #{tpu_custom_call.1} parent=1 // loop_header
      %s13 = sphi 0, %s17
      %p14 = scmp.ge.s32.totalorder %s13, 14
      %s20 = sphi 0, %s32
      %s21 = sphi 0, %s28
      %s22 = sphi 0, %s20
      %s23 = sphi 0, %s21
      %s24 = sphi 0, %s22
      %s25 = sphi 0, %s23
      %s37 = sphi 0, %s39
      %s40 = sphi 0, %s37
      %s41 = sphi 0, %s40
      %s57 = sphi 0, %s41
      %s63 = sphi 0, %s65
      %s66 = sphi 0, %s63
      %s67 = sphi 0, %s66
      %s83 = sphi 0, %s67
    $region4: #{tpu_custom_call.1} parent=1 // loop_header_branch
      %16 = sbr.rel (%p14) target = $region8
    $region5: #{tpu_custom_call.1} parent=1 // loop_body
      %s18 = ssub.s32 %s13, 1
      %s19 = ssub.s32 %s13, 2
      %s26 = sadd.s32 1, %s21
      %p27 = scmp.ge.s32.totalorder %s26, 4
      %s28 = scalar_select %p27, 0, %s26
      %s29 = sadd.s32 1, %s20
      %s30 = scalar_select %p27, %s29, %s20
      %p31 = scmp.ge.s32.totalorder %s30, 3
      %s32 = scalar_select %p31, 0, %s30
      %s33 = ssub.s32 %s21, %s28
      %s34 = ssub.s32 %s20, %s32
      %s35 = sor.u32 %s33, %s34
      %p36 = scmp.eq.s32.totalorder %s35, 0
      %s38 = sadd.s32 %s37, 1
      %s39 = scalar_select %p36, %s37, %s38
      %p42 = pneg %p36
      %p43 = scmp.eq.s32.totalorder %s13, 11
      %p44 = por %p42, %p43
      %p45 = scmp.ne.s32.totalorder %s37, %s40
      %p46 = scmp.eq.s32.totalorder %s13, 0
      %p47 = por %p45, %p46
      %p48 = scmp.ne.s32.totalorder %s37, %s40
      %p49 = scmp.eq.s32.totalorder %s18, 11
      %p50 = por %p48, %p49
      %p51 = scmp.ne.s32.totalorder %s40, %s41
      %p52 = scmp.eq.s32.totalorder %s18, 0
      %p53 = por %p51, %p52
      %p54 = scmp.ne.s32.totalorder %s40, %s41
      %p55 = scmp.eq.s32.totalorder %s19, 11
      %p56 = por %p54, %p55
      %p58 = scmp.ne.s32.totalorder %s41, %s57
      %p59 = scmp.eq.s32.totalorder %s19, 0
      %p60 = por %p58, %p59
      %s61 = ssub.s32 %s20, %s32
      %p62 = scmp.eq.s32.totalorder %s61, 0
      %s64 = sadd.s32 %s63, 1
      %s65 = scalar_select %p62, %s63, %s64
      %p68 = pneg %p62
      %p69 = scmp.eq.s32.totalorder %s13, 11
      %p70 = por %p68, %p69
      %p71 = scmp.ne.s32.totalorder %s63, %s66
      %p72 = scmp.eq.s32.totalorder %s13, 0
      %p73 = por %p71, %p72
      %p74 = scmp.ne.s32.totalorder %s63, %s66
      %p75 = scmp.eq.s32.totalorder %s18, 11
      %p76 = por %p74, %p75
      %p77 = scmp.ne.s32.totalorder %s66, %s67
      %p78 = scmp.eq.s32.totalorder %s18, 0
      %p79 = por %p77, %p78
      %p80 = scmp.ne.s32.totalorder %s66, %s67
      %p81 = scmp.eq.s32.totalorder %s19, 11
      %p82 = por %p80, %p81
      %p84 = scmp.ne.s32.totalorder %s67, %s83
      %p85 = scmp.eq.s32.totalorder %s19, 0
      %p86 = por %p84, %p85
      %p87 = scmp.le.s32.totalorder 1, %s13
      %p88 = scmp.lt.s32.totalorder %s13, 13
      %p89 = pnand %p87, %p88
      %p90 = pneg %p89
      // Predicated region
      $region9: #{tpu_custom_call.1} parent=5 // pred_check
        _
      $region10: #{tpu_custom_call.1} parent=5 // pred_check_branch
        %92 = sbr.rel (%p89) target = $region12
      $region11: #{tpu_custom_call.1} parent=5 // pred_region
        %s93 = ssub.s32 %s13, 1
      $region12: #{tpu_custom_call.1} parent=5 // pred_fallthru
        _
      %p94 = scmp.lt.s32.totalorder %s13, 12
      // Predicated region
      $region13: #{tpu_custom_call.1} parent=5 // pred_check
        %p95 = pneg %p94
      $region14: #{tpu_custom_call.1} parent=5 // pred_check_branch
        %97 = sbr.rel (%p95) target = $region16
      $region15: #{tpu_custom_call.1} parent=5 // pred_region
        // Predicated region
        $region17: #{tpu_custom_call.1} parent=15 // pred_check
          %p98 = pneg %p47
        $region18: #{tpu_custom_call.1} parent=15 // pred_check_branch
          %100 = sbr.rel (%p98) target = $region20
        $region19: #{tpu_custom_call.1} parent=15 // pred_region
          %s101 = sand.u32 %s37, 1
          %s102 = scalar_lea.sflag [#allocation4], %s101
          %s103 = sand.u32 %s37, 1
          %s104 = smul.addr %s103, 256
          %s105 = scalar_lea.vmem [#allocation3], %s104
          %s106 = smul.u32 32, %s21
          %s107 = ssub.s32 125, %s106
          %p108 = scmp.lt.s32.totalorder %s107, 32
          %s109 = scalar_select %p108, %s107, 32
          %s110 = smul.u32 128, %s109
          %s112 = ssub.s32 4096, %s110
          %113 = vsyncadd %s102, %s112
          %p114 = scmp.ne.s32.totalorder 0, %s110
          %s115 = smul.addr %s106, 3
          %s116 = sadd.s32 %s20, %s115
          %s117 = smul.addr %s116, 128
          %s118 = scalar_lea.hbm %s0, %s117
          %s119 = smul.u32 8, %s109
          %s120 = sshll.u32 %s105, 4
          %s121 = int_to_ptr.vmem [resolvable:$true] %s120
          %s122 = sshll.u32 %s119, 4
          %126 = dma.hbm_to_vmem [thread:$0]  (%p114), %s118, %s122, %s121, %s102, 384, 128, 8
        $region20: #{tpu_custom_call.1} parent=15 // pred_fallthru
          _
      $region16: #{tpu_custom_call.1} parent=5 // pred_fallthru
        _
      %p127 = scmp.le.s32.totalorder 1, %s13
      %p128 = scmp.lt.s32.totalorder %s13, 13
      %p129 = pnand %p127, %p128
      %p130 = pneg %p129
      // Predicated region
      $region21: #{tpu_custom_call.1} parent=5 // pred_check
        _
      $region22: #{tpu_custom_call.1} parent=5 // pred_check_branch
        %132 = sbr.rel (%p129) target = $region24
      $region23: #{tpu_custom_call.1} parent=5 // pred_region
        %s133 = ssub.s32 %s13, 1
        %s134 = sand.u32 %s40, 1
        %s135 = scalar_lea.sflag [#allocation4], %s134
        %s136 = sand.u32 %s40, 1
        %s137 = smul.addr %s136, 256
        %s138 = scalar_lea.vmem [#allocation3], %s137
        // Predicated region
        $region25: #{tpu_custom_call.1} parent=23 // pred_check
          %p139 = pneg %p53
        $region26: #{tpu_custom_call.1} parent=23 // pred_check_branch
          %141 = sbr.rel (%p139) target = $region28
        $region27: #{tpu_custom_call.1} parent=23 // pred_region
          %142 = dma.done %s135, 4096
        $region28: #{tpu_custom_call.1} parent=23 // pred_fallthru
          _
        %s143 = sand.u32 %s40, 1
        %s144 = scalar_lea.sflag [#allocation4], %s143
        %s145 = sand.u32 %s40, 1
        %s146 = smul.addr %s145, 256
        %s147 = scalar_lea.vmem [#allocation3], %s146
        %p148 = pneg %p53
        %p149 = pneg %p50
        %p150 = pneg %p79
        %p151 = pneg %p76
        %s152 = sand.u32 %s66, 1
        %s153 = scalar_lea.sflag [#allocation5], %s152
        %s154 = sand.u32 %s66, 1
        %s155 = scalar_lea.vmem [#allocation6], %s154
        %s156 = smul.u32 32, %s23
        %s157 = ssub.s32 125, %s156
        %p158 = scmp.lt.s32.totalorder %s157, 32
        %s159 = scalar_select %p158, %s157, 32
        %s160 = smul.u32 128, %s159
        %p161 = scmp.eq.s32.totalorder %s23, 0
        // Predicated region
        $region29: #{tpu_custom_call.1} parent=23 // pred_check
          %p162 = pneg %p161
        $region30: #{tpu_custom_call.1} parent=23 // pred_check_branch
          %164 = sbr.rel (%p162) target = $region32
        $region31: #{tpu_custom_call.1} parent=23 // pred_region
          %165 = vst [vmem:[#allocation2] sm:$0xff] 0.0
        $region32: #{tpu_custom_call.1} parent=23 // pred_fallthru
          _
        %p166 = scmp.lt.s32.totalorder %s23, 3
        // Predicated region
        $region33: #{tpu_custom_call.1} parent=23 // pred_check
          %p167 = pneg %p166
        $region34: #{tpu_custom_call.1} parent=23 // pred_check_branch
          %169 = sbr.rel (%p167) target = $region36
        $region35: #{tpu_custom_call.1} parent=23 // pred_region
          %v170 = vld [vmem:[%s138] sm:$0xff]
          %v171 = vld [vmem:[%s138 + $0x8] sm:$0xff]
          %v172 = vld [vmem:[%s138 + $0x10] sm:$0xff]
          %v173 = vld [vmem:[%s138 + $0x18] sm:$0xff]
          %v174 = vld [vmem:[%s138 + $0x20] sm:$0xff]
          %v175 = vld [vmem:[%s138 + $0x28] sm:$0xff]
          %v176 = vld [vmem:[%s138 + $0x30] sm:$0xff]
          %v177 = vld [vmem:[%s138 + $0x38] sm:$0xff]
          %v178 = vld [vmem:[%s138 + $0x40] sm:$0xff]
          %v179 = vld [vmem:[%s138 + $0x48] sm:$0xff]
          %v180 = vld [vmem:[%s138 + $0x50] sm:$0xff]
          %v181 = vld [vmem:[%s138 + $0x58] sm:$0xff]
          %v182 = vld [vmem:[%s138 + $0x60] sm:$0xff]
          %v183 = vld [vmem:[%s138 + $0x68] sm:$0xff]
          %v184 = vld [vmem:[%s138 + $0x70] sm:$0xff]
          %v185 = vld [vmem:[%s138 + $0x78] sm:$0xff]
          %v186 = vld [vmem:[%s138 + $0x80] sm:$0xff]
          %v187 = vld [vmem:[%s138 + $0x88] sm:$0xff]
          %v188 = vld [vmem:[%s138 + $0x90] sm:$0xff]
          %v189 = vld [vmem:[%s138 + $0x98] sm:$0xff]
          %v190 = vld [vmem:[%s138 + $0xa0] sm:$0xff]
          %v191 = vld [vmem:[%s138 + $0xa8] sm:$0xff]
          %v192 = vld [vmem:[%s138 + $0xb0] sm:$0xff]
          %v193 = vld [vmem:[%s138 + $0xb8] sm:$0xff]
          %v194 = vld [vmem:[%s138 + $0xc0] sm:$0xff]
          %v195 = vld [vmem:[%s138 + $0xc8] sm:$0xff]
          %v196 = vld [vmem:[%s138 + $0xd0] sm:$0xff]
          %v197 = vld [vmem:[%s138 + $0xd8] sm:$0xff]
          %v198 = vld [vmem:[%s138 + $0xe0] sm:$0xff]
          %v199 = vld [vmem:[%s138 + $0xe8] sm:$0xff]
          %v200 = vld [vmem:[%s138 + $0xf0] sm:$0xff]
          %v201 = vld [vmem:[%s138 + $0xf8] sm:$0xff]
          %v202 = vld [vmem:[#allocation2] sm:$0xff]
          %v203 = vadd.f32 %v170, %v171
          %v204 = vadd.f32 %v203, %v172
          %v205 = vadd.f32 %v204, %v173
          %v206 = vadd.f32 %v205, %v174
          %v207 = vadd.f32 %v206, %v175
          %v208 = vadd.f32 %v207, %v176
          %v209 = vadd.f32 %v208, %v177
          %v210 = vadd.f32 %v209, %v178
          %v211 = vadd.f32 %v210, %v179
          %v212 = vadd.f32 %v211, %v180
          %v213 = vadd.f32 %v212, %v181
          %v214 = vadd.f32 %v213, %v182
          %v215 = vadd.f32 %v214, %v183
          %v216 = vadd.f32 %v215, %v184
          %v217 = vadd.f32 %v216, %v185
          %v218 = vadd.f32 %v217, %v186
          %v219 = vadd.f32 %v218, %v187
          %v220 = vadd.f32 %v219, %v188
          %v221 = vadd.f32 %v220, %v189
          %v222 = vadd.f32 %v221, %v190
          %v223 = vadd.f32 %v222, %v191
          %v224 = vadd.f32 %v223, %v192
          %v225 = vadd.f32 %v224, %v193
          %v226 = vadd.f32 %v225, %v194
          %v227 = vadd.f32 %v226, %v195
          %v228 = vadd.f32 %v227, %v196
          %v229 = vadd.f32 %v228, %v197
          %v230 = vadd.f32 %v229, %v198
          %v231 = vadd.f32 %v230, %v199
          %v232 = vadd.f32 %v231, %v200
          %v233 = vadd.f32 %v232, %v201
          %v234 = vadd.f32 %v202, %v233
          %235 = vst [vmem:[#allocation2] sm:$0xff] %v234
        $region36: #{tpu_custom_call.1} parent=23 // pred_fallthru
          _
        %p236 = scmp.eq.s32.totalorder %s23, 3
        // Predicated region
        $region37: #{tpu_custom_call.1} parent=23 // pred_check
          %p237 = pneg %p236
        $region38: #{tpu_custom_call.1} parent=23 // pred_check_branch
          %239 = sbr.rel (%p237) target = $region40
        $region39: #{tpu_custom_call.1} parent=23 // pred_region
          %v240 = vld [vmem:[%s138] sm:$0xff]
          %v241 = vld [vmem:[%s138 + $0x8] sm:$0xff]
          %v242 = vld [vmem:[%s138 + $0x10] sm:$0xff]
          %v243 = vld [vmem:[%s138 + $0x18] sm:$0xff]
          %v244 = vld [vmem:[%s138 + $0x20] sm:$0xff]
          %v245 = vld [vmem:[%s138 + $0x28] sm:$0xff]
          %v246 = vld [vmem:[%s138 + $0x30] sm:$0xff]
          %v247 = vld [vmem:[%s138 + $0x38] sm:$0xff]
          %v248 = vld [vmem:[%s138 + $0x40] sm:$0xff]
          %v249 = vld [vmem:[%s138 + $0x48] sm:$0xff]
          %v250 = vld [vmem:[%s138 + $0x50] sm:$0xff]
          %v251 = vld [vmem:[%s138 + $0x58] sm:$0xff]
          %v252 = vld [vmem:[%s138 + $0x60] sm:$0xff]
          %v253 = vld [vmem:[%s138 + $0x68] sm:$0xff]
          %v254 = vld [vmem:[%s138 + $0x70] sm:$0xff]
          %v255 = vld [vmem:[%s138 + $0x78] sm:$0xff]
          %v256 = vld [vmem:[%s138 + $0x80] sm:$0xff]
          %v257 = vld [vmem:[%s138 + $0x88] sm:$0xff]
          %v258 = vld [vmem:[%s138 + $0x90] sm:$0xff]
          %v259 = vld [vmem:[%s138 + $0x98] sm:$0xff]
          %v260 = vld [vmem:[%s138 + $0xa0] sm:$0xff]
          %v261 = vld [vmem:[%s138 + $0xa8] sm:$0xff]
          %v262 = vld [vmem:[%s138 + $0xb0] sm:$0xff]
          %v263 = vld [vmem:[%s138 + $0xb8] sm:$0xff]
          %v264 = vld [vmem:[%s138 + $0xc0] sm:$0xff]
          %v265 = vld [vmem:[%s138 + $0xc8] sm:$0xff]
          %v266 = vld [vmem:[%s138 + $0xd0] sm:$0xff]
          %v267 = vld [vmem:[%s138 + $0xd8] sm:$0xff]
          %v268 = vld [vmem:[%s138 + $0xe0] sm:$0xff]
          %v269 = vld [vmem:[%s138 + $0xe8] sm:$0xff]
          %v270 = vld [vmem:[%s138 + $0xf0] sm:$0xff]
          %v271 = vld [vmem:[%s138 + $0xf8] sm:$0xff]
          %s272 = smul.u32 %s23, 256
          %v273 = vlaneseq
          %v274 = vshrl.u32 %v273, 7
          %v275 = vadd.s32 %v274, 8
          %v276 = vadd.s32 %v274, 16
          %v277 = vadd.s32 %v274, 24
          %v278 = vadd.s32 %v274, 32
          %v279 = vadd.s32 %v274, 40
          %v280 = vadd.s32 %v274, 48
          %v281 = vadd.s32 %v274, 56
          %v282 = vadd.s32 %v274, 64
          %v283 = vadd.s32 %v274, 72
          %v284 = vadd.s32 %v274, 80
          %v285 = vadd.s32 %v274, 88
          %v286 = vadd.s32 %v274, 96
          %v287 = vadd.s32 %v274, 104
          %v288 = vadd.s32 %v274, 112
          %v289 = vadd.s32 %v274, 120
          %v290 = vadd.s32 %v274, 128
          %v291 = vadd.s32 %v274, 136
          %v292 = vadd.s32 %v274, 144
          %v293 = vadd.s32 %v274, 152
          %v294 = vadd.s32 %v274, 160
          %v295 = vadd.s32 %v274, 168
          %v296 = vadd.s32 %v274, 176
          %v297 = vadd.s32 %v274, 184
          %v298 = vadd.s32 %v274, 192
          %v299 = vadd.s32 %v274, 200
          %v300 = vadd.s32 %v274, 208
          %v301 = vadd.s32 %v274, 216
          %v302 = vadd.s32 %v274, 224
          %v303 = vadd.s32 %v274, 232
          %v304 = vadd.s32 %v274, 240
          %v305 = vadd.s32 %v274, 248
          %v306 = vstv %s272
          %v307 = vadd.s32 %v306, %v274
          %v308 = vadd.s32 %v306, %v275
          %v309 = vadd.s32 %v306, %v276
          %v310 = vadd.s32 %v306, %v277
          %v311 = vadd.s32 %v306, %v278
          %v312 = vadd.s32 %v306, %v279
          %v313 = vadd.s32 %v306, %v280
          %v314 = vadd.s32 %v306, %v281
          %v315 = vadd.s32 %v306, %v282
          %v316 = vadd.s32 %v306, %v283
          %v317 = vadd.s32 %v306, %v284
          %v318 = vadd.s32 %v306, %v285
          %v319 = vadd.s32 %v306, %v286
          %v320 = vadd.s32 %v306, %v287
          %v321 = vadd.s32 %v306, %v288
          %v322 = vadd.s32 %v306, %v289
          %v323 = vadd.s32 %v306, %v290
          %v324 = vadd.s32 %v306, %v291
          %v325 = vadd.s32 %v306, %v292
          %v326 = vadd.s32 %v306, %v293
          %v327 = vadd.s32 %v306, %v294
          %v328 = vadd.s32 %v306, %v295
          %v329 = vadd.s32 %v306, %v296
          %v330 = vadd.s32 %v306, %v297
          %v331 = vadd.s32 %v306, %v298
          %v332 = vadd.s32 %v306, %v299
          %v333 = vadd.s32 %v306, %v300
          %v334 = vadd.s32 %v306, %v301
          %v335 = vadd.s32 %v306, %v302
          %v336 = vadd.s32 %v306, %v303
          %v337 = vadd.s32 %v306, %v304
          %v338 = vadd.s32 %v306, %v305
          %vm339 = vcmp.lt.s32.totalorder %v307, 1000
          %vm340 = vcmp.lt.s32.totalorder %v308, 1000
          %vm341 = vcmp.lt.s32.totalorder %v309, 1000
          %vm342 = vcmp.lt.s32.totalorder %v310, 1000
          %vm343 = vcmp.lt.s32.totalorder %v311, 1000
          %vm344 = vcmp.lt.s32.totalorder %v312, 1000
          %vm345 = vcmp.lt.s32.totalorder %v313, 1000
          %vm346 = vcmp.lt.s32.totalorder %v314, 1000
          %vm347 = vcmp.lt.s32.totalorder %v315, 1000
          %vm348 = vcmp.lt.s32.totalorder %v316, 1000
          %vm349 = vcmp.lt.s32.totalorder %v317, 1000
          %vm350 = vcmp.lt.s32.totalorder %v318, 1000
          %vm351 = vcmp.lt.s32.totalorder %v319, 1000
          %vm352 = vcmp.lt.s32.totalorder %v320, 1000
          %vm353 = vcmp.lt.s32.totalorder %v321, 1000
          %vm354 = vcmp.lt.s32.totalorder %v322, 1000
          %vm355 = vcmp.lt.s32.totalorder %v323, 1000
          %vm356 = vcmp.lt.s32.totalorder %v324, 1000
          %vm357 = vcmp.lt.s32.totalorder %v325, 1000
          %vm358 = vcmp.lt.s32.totalorder %v326, 1000
          %vm359 = vcmp.lt.s32.totalorder %v327, 1000
          %vm360 = vcmp.lt.s32.totalorder %v328, 1000
          %vm361 = vcmp.lt.s32.totalorder %v329, 1000
          %vm362 = vcmp.lt.s32.totalorder %v330, 1000
          %vm363 = vcmp.lt.s32.totalorder %v331, 1000
          %vm364 = vcmp.lt.s32.totalorder %v332, 1000
          %vm365 = vcmp.lt.s32.totalorder %v333, 1000
          %vm366 = vcmp.lt.s32.totalorder %v334, 1000
          %vm367 = vcmp.lt.s32.totalorder %v335, 1000
          %vm368 = vcmp.lt.s32.totalorder %v336, 1000
          %vm369 = vcmp.lt.s32.totalorder %v337, 1000
          %vm370 = vcmp.lt.s32.totalorder %v338, 1000
          %v371 = vsel %vm339, %v240, 0.0
          %v372 = vsel %vm340, %v241, 0.0
          %v373 = vsel %vm341, %v242, 0.0
          %v374 = vsel %vm342, %v243, 0.0
          %v375 = vsel %vm343, %v244, 0.0
          %v376 = vsel %vm344, %v245, 0.0
          %v377 = vsel %vm345, %v246, 0.0
          %v378 = vsel %vm346, %v247, 0.0
          %v379 = vsel %vm347, %v248, 0.0
          %v380 = vsel %vm348, %v249, 0.0
          %v381 = vsel %vm349, %v250, 0.0
          %v382 = vsel %vm350, %v251, 0.0
          %v383 = vsel %vm351, %v252, 0.0
          %v384 = vsel %vm352, %v253, 0.0
          %v385 = vsel %vm353, %v254, 0.0
          %v386 = vsel %vm354, %v255, 0.0
          %v387 = vsel %vm355, %v256, 0.0
          %v388 = vsel %vm356, %v257, 0.0
          %v389 = vsel %vm357, %v258, 0.0
          %v390 = vsel %vm358, %v259, 0.0
          %v391 = vsel %vm359, %v260, 0.0
          %v392 = vsel %vm360, %v261, 0.0
          %v393 = vsel %vm361, %v262, 0.0
          %v394 = vsel %vm362, %v263, 0.0
          %v395 = vsel %vm363, %v264, 0.0
          %v396 = vsel %vm364, %v265, 0.0
          %v397 = vsel %vm365, %v266, 0.0
          %v398 = vsel %vm366, %v267, 0.0
          %v399 = vsel %vm367, %v268, 0.0
          %v400 = vsel %vm368, %v269, 0.0
          %v401 = vsel %vm369, %v270, 0.0
          %v402 = vsel %vm370, %v271, 0.0
          %v403 = vld [vmem:[#allocation2] sm:$0xff]
          %v404 = vadd.f32 %v371, %v372
          %v405 = vadd.f32 %v404, %v373
          %v406 = vadd.f32 %v405, %v374
          %v407 = vadd.f32 %v406, %v375
          %v408 = vadd.f32 %v407, %v376
          %v409 = vadd.f32 %v408, %v377
          %v410 = vadd.f32 %v409, %v378
          %v411 = vadd.f32 %v410, %v379
          %v412 = vadd.f32 %v411, %v380
          %v413 = vadd.f32 %v412, %v381
          %v414 = vadd.f32 %v413, %v382
          %v415 = vadd.f32 %v414, %v383
          %v416 = vadd.f32 %v415, %v384
          %v417 = vadd.f32 %v416, %v385
          %v418 = vadd.f32 %v417, %v386
          %v419 = vadd.f32 %v418, %v387
          %v420 = vadd.f32 %v419, %v388
          %v421 = vadd.f32 %v420, %v389
          %v422 = vadd.f32 %v421, %v390
          %v423 = vadd.f32 %v422, %v391
          %v424 = vadd.f32 %v423, %v392
          %v425 = vadd.f32 %v424, %v393
          %v426 = vadd.f32 %v425, %v394
          %v427 = vadd.f32 %v426, %v395
          %v428 = vadd.f32 %v427, %v396
          %v429 = vadd.f32 %v428, %v397
          %v430 = vadd.f32 %v429, %v398
          %v431 = vadd.f32 %v430, %v399
          %v432 = vadd.f32 %v431, %v400
          %v433 = vadd.f32 %v432, %v401
          %v434 = vadd.f32 %v433, %v402
          %v435 = vadd.f32 %v403, %v434
          %436 = vst [vmem:[#allocation2] sm:$0xff] %v435
          %v437 = vld [vmem:[#allocation2] sm:$0xff]
          %v438 = vrot.slane %v437, 4
          %v439 = vadd.f32 %v437, %v438
          %v440 = vrot.slane %v439, 2
          %v441 = vadd.f32 %v439, %v440
          %v442 = vrot.slane %v441, 1
          %v443 = vadd.f32 %v441, %v442
          %v444 = vmul.f32 %v443, 0.001
          %445 = vst [vmem:[%s155] sm:$0x1] %v444
        $region40: #{tpu_custom_call.1} parent=23 // pred_fallthru
          _
        %s446 = sand.u32 %s66, 1
        %s447 = scalar_lea.sflag [#allocation5], %s446
        %s448 = sand.u32 %s66, 1
        %s449 = scalar_lea.vmem [#allocation6], %s448
        // Predicated region
        $region41: #{tpu_custom_call.1} parent=23 // pred_check
          %p450 = pneg %p76
        $region42: #{tpu_custom_call.1} parent=23 // pred_check_branch
          %452 = sbr.rel (%p450) target = $region44
        $region43: #{tpu_custom_call.1} parent=23 // pred_region
          %s454 = ssub.s32 16, 16
          %455 = vsyncadd %s447, %s454
          %s456 = smul.addr %s22, 16
          %s457 = scalar_lea.hbm %s1, %s456
          %s459 = sshll.u32 %s449, 4
          %s460 = int_to_ptr.vmem [resolvable:$true] %s459
          %462 = dma.vmem_to_hbm [thread:$0]  %s460, 16, %s457, %s447
        $region44: #{tpu_custom_call.1} parent=23 // pred_fallthru
          _
      $region24: #{tpu_custom_call.1} parent=5 // pred_fallthru
        _
      %p463 = scmp.le.s32.totalorder 2, %s13
      // Predicated region
      $region45: #{tpu_custom_call.1} parent=5 // pred_check
        %p464 = pneg %p463
      $region46: #{tpu_custom_call.1} parent=5 // pred_check_branch
        %466 = sbr.rel (%p464) target = $region48
      $region47: #{tpu_custom_call.1} parent=5 // pred_region
        %s467 = ssub.s32 %s13, 2
        // Predicated region
        $region49: #{tpu_custom_call.1} parent=47 // pred_check
          %p468 = pneg %p82
        $region50: #{tpu_custom_call.1} parent=47 // pred_check_branch
          %470 = sbr.rel (%p468) target = $region52
        $region51: #{tpu_custom_call.1} parent=47 // pred_region
          %s471 = sand.u32 %s67, 1
          %s472 = scalar_lea.sflag [#allocation5], %s471
          %s473 = sand.u32 %s67, 1
          %s474 = scalar_lea.vmem [#allocation6], %s473
          %475 = dma.done %s472, 16
        $region52: #{tpu_custom_call.1} parent=47 // pred_fallthru
          _
      $region48: #{tpu_custom_call.1} parent=5 // pred_fallthru
        _
    $region6: #{tpu_custom_call.1} parent=1 // loop_footer
      %s17 = sadd.s32 1, %s13
    $region7: #{tpu_custom_call.1} parent=1 // loop_footer_branch
      %12 = sbr.rel target = $region3
    $region8: #{tpu_custom_call.1} parent=1 // loop_exit
      _
    %476 = vsyncpa [#allocation4], 1
    %s477 = scalar_lea.sflag [#allocation4], 1
    %478 = vsyncpa %s477, 1
    %479 = vsyncpa [#allocation5], 1
    %s480 = scalar_lea.sflag [#allocation5], 1
    %481 = vsyncpa %s480, 1

</llo_original>
